<compile_context>
chip_gen: v7x
topology: tpu7x:2x2x1
jax: 0.10.0
libtpu: 0.0.40
codegen_flags: <defaults>
</compile_context>

<pallas_src>
import jax
import jax.numpy as jnp
from jax import lax
from jax.experimental import pallas as pl
from jax.experimental.pallas import tpu as pltpu

EPS = 1e-5
VMEM_LIMIT = 32 * 1024 * 1024   # explicit scoped-VMEM budget (safe v5e/v6e/v7x)


def _round_up(x, m):
    return (x + m - 1) // m * m


# ------------------------------ Pallas kernels ------------------------------ #

def _mm_bn_kernel(a_ref, b_ref, o_ref, sum_ref, sq_ref, acc_ref):
    """Tiled matmul with fused per-channel sum / sum-of-squares (BN stats).

    Grid = (j over N blocks [parallel], i over M blocks, p over parities,
            k over K blocks).  Stats output block index is (0, j): constant
    across the inner i/p/k axes -> stays resident in VMEM and is accumulated
    straight off the f32 accumulator at each last-k step.
    """
    i = pl.program_id(1)
    p = pl.program_id(2)
    k = pl.program_id(3)
    nk = pl.num_programs(3)

    @pl.when(k == 0)
    def _():
        acc_ref[...] = jnp.zeros_like(acc_ref)

    @pl.when((i == 0) & (p == 0) & (k == 0))
    def _():
        sum_ref[...] = jnp.zeros_like(sum_ref)
        sq_ref[...] = jnp.zeros_like(sq_ref)

    acc_ref[...] += jnp.dot(a_ref[0], b_ref[0],
                            preferred_element_type=jnp.float32)

    @pl.when(k == nk - 1)
    def _():
        acc = acc_ref[...]
        o_ref[0] = acc.astype(o_ref.dtype)
        sum_ref[...] += jnp.sum(acc, axis=0, keepdims=True)
        sq_ref[...] += jnp.sum(acc * acc, axis=0, keepdims=True)


def _mm_bias_sigmoid_kernel(a_ref, b_ref, bias_ref, o_ref, acc_ref):
    """Tiled matmul + bias + sigmoid epilogue (deconv6, the only non-BN layer)."""
    k = pl.program_id(3)
    nk = pl.num_programs(3)

    @pl.when(k == 0)
    def _():
        acc_ref[...] = jnp.zeros_like(acc_ref)

    acc_ref[...] += jnp.dot(a_ref[0], b_ref[0],
                            preferred_element_type=jnp.float32)

    @pl.when(k == nk - 1)
    def _():
        x = acc_ref[...] + bias_ref[...]
        e = jnp.exp(-jnp.abs(x))                    # numerically stable sigmoid
        o_ref[0] = jnp.where(x >= 0.0, 1.0 / (1.0 + e), e / (1.0 + e))


def _scale_shift_relu_kernel(x_ref, s_ref, t_ref, o_ref):
    """BN apply: y = relu(scale*x + shift); bf16 in -> f32 math -> bf16 out."""
    x = x_ref[...].astype(jnp.float32)
    y = jnp.maximum(x * s_ref[...] + t_ref[...], 0.0)
    o_ref[...] = y.astype(o_ref.dtype)


# ------------------------------ tile selection ------------------------------ #

def _pad_k(K):
    return _round_up(K, 16)


def _pad_n(N):
    return _round_up(N, 128) if N >= 128 else _round_up(N, 8)


def _pick_kblock(Kp, cap):
    """Largest multiple-of-128 divisor of Kp <= cap (or full extent if small)."""
    if Kp <= cap or Kp % 128 != 0:
        return Kp
    best = 128
    b = 256
    while b <= cap:
        if Kp % b == 0:
            best = b
        b += 128
    return best


def _pick_nblock(Np):
    if Np <= 128:
        return Np
    if Np % 256 == 0 and Np > 256:
        return 256          # N=512 layers -> j extent 2 (v7x megacore)
    if Np % 128 == 0:
        return 128
    return Np


def _pick_mblock(Mp, bk, bn):
    """Biggest M block that keeps A / acc / out tiles comfortably in VMEM."""
    if Mp <= 512:
        return Mp
    for bm in (4096, 2048, 1024, 512, 256, 128):
        if Mp % bm:
            continue
        a_bytes = bm * bk * 2
        acc_out_bytes = bm * bn * 4 + 2 * bm * bn * 2
        if a_bytes <= 2 * 1024 * 1024 and acc_out_bytes <= 4 * 1024 * 1024:
            return bm
    return 512 if Mp % 512 == 0 else 128


def _pick_rows(R, cap=2048):
    """Row block for the elementwise BN-apply pass over a flat (R, C) slab."""
    Rp = _round_up(R, 8)
    if Rp <= cap:
        return Rp, Rp
    for b in (cap, 1024, 512, 256, 128, 64, 32, 16, 8):
        if Rp % b == 0:
            return b, Rp
    return cap, _round_up(Rp, cap)


# ------------------------------ Pallas wrappers ------------------------------ #

def fused_matmul_bn_stats(a, b):
    """(P,M,K) @ (P,Kp,Np) -> bf16 (P,Mp,Np) plus f32 column sum / sum-of-squares.

    `b` is a pre-padded bf16 weight stack from prepare_params; zero-padded rows
    of `a` contribute zero to the stats (divide by the true count outside).
    """
    P, M, K = a.shape
    Pb, Kp, Np = b.shape
    assert Pb == P and Kp >= K
    Mp = _round_up(M, 8)
    cap = 2304 if Mp <= 128 else 1152          # big K blocks for small-M layers
    bk = _pick_kblock(Kp, cap)
    bn = _pick_nblock(Np)
    bm = _pick_mblock(Mp, bk, bn)

    ap = jnp.pad(a, ((0, 0), (0, Mp - M), (0, Kp - K))).astype(jnp.bfloat16)
    grid = (Np // bn, Mp // bm, P, Kp // bk)

    out, ssum, ssq = pl.pallas_call(
        _mm_bn_kernel,
        out_shape=(jax.ShapeDtypeStruct((P, Mp, Np), jnp.bfloat16),
                   jax.ShapeDtypeStruct((1, Np), jnp.float32),
                   jax.ShapeDtypeStruct((1, Np), jnp.float32)),
        grid_spec=pltpu.PrefetchScalarGridSpec(
            num_scalar_prefetch=0,
            grid=grid,
            in_specs=[pl.BlockSpec((1, bm, bk), lambda j, i, p, k: (p, i, k)),
                      pl.BlockSpec((1, bk, bn), lambda j, i, p, k: (p, k, j))],
            out_specs=(pl.BlockSpec((1, bm, bn), lambda j, i, p, k: (p, i, j)),
                       pl.BlockSpec((1, bn), lambda j, i, p, k: (0, j)),
                       pl.BlockSpec((1, bn), lambda j, i, p, k: (0, j))),
            scratch_shapes=[pltpu.VMEM((bm, bn), jnp.float32)],
        ),
        compiler_params=pltpu.CompilerParams(
            # stats accumulate across i/p/k -> those axes stay "arbitrary";
            # the N-block axis j is the megacore-parallel one.
            dimension_semantics=("parallel", "arbitrary", "arbitrary", "arbitrary"),
            vmem_limit_bytes=VMEM_LIMIT),
    )(ap, b)
    return out, ssum[0], ssq[0]


def fused_matmul_bias_sigmoid(a, b, bias_padded):
    """(P,M,K) @ (P,Kp,Np) + bias -> sigmoid, f32 (P,Mp,Np). Used by deconv6."""
    P, M, K = a.shape
    _, Kp, Np = b.shape
    Mp = _round_up(M, 8)
    cap = 2304 if Mp <= 128 else 1152
    bk = _pick_kblock(Kp, cap)
    bn = _pick_nblock(Np)
    bm = _pick_mblock(Mp, bk, bn)

    ap = jnp.pad(a, ((0, 0), (0, Mp - M), (0, Kp - K))).astype(jnp.bfloat16)
    grid = (Np // bn, Mp // bm, P, Kp // bk)

    return pl.pallas_call(
        _mm_bias_sigmoid_kernel,
        out_shape=jax.ShapeDtypeStruct((P, Mp, Np), jnp.float32),
        grid_spec=pltpu.PrefetchScalarGridSpec(
            num_scalar_prefetch=0,
            grid=grid,
            in_specs=[pl.BlockSpec((1, bm, bk), lambda j, i, p, k: (p, i, k)),
                      pl.BlockSpec((1, bk, bn), lambda j, i, p, k: (p, k, j)),
                      pl.BlockSpec((1, bn), lambda j, i, p, k: (0, j))],
            out_specs=pl.BlockSpec((1, bm, bn), lambda j, i, p, k: (p, i, j)),
            scratch_shapes=[pltpu.VMEM((bm, bn), jnp.float32)],
        ),
        compiler_params=pltpu.CompilerParams(
            dimension_semantics=("parallel", "parallel", "parallel", "arbitrary"),
            vmem_limit_bytes=VMEM_LIMIT),
    )(ap, b, bias_padded)


def bn_relu_apply(flat, ssum, ssq, count, gamma, beta):
    """Training-mode BN apply + ReLU on a flat (R, C) bf16 slab -> bf16.

    ssum/ssq are the fused f32 stats from the matmul; `count` is the true
    number of (non-padded) rows.  C=64 slabs are folded to a lane-dense
    (R/2, 128) view (scale/shift tiled) to avoid masked partial stores.
    """
    R, C = flat.shape
    mean = ssum[:C] / count
    var = ssq[:C] / count - mean * mean                 # biased variance
    scale = gamma * lax.rsqrt(var + EPS)
    shift = beta - mean * scale

    fold = 1
    if C < 128 and 128 % C == 0 and R % (128 // C) == 0:
        fold = 128 // C
    if fold > 1:
        flat = flat.reshape(R // fold, C * fold)
        scale = jnp.tile(scale, fold)
        shift = jnp.tile(shift, fold)

    R2, C2 = flat.shape
    bm, Rp = _pick_rows(R2)
    fp = jnp.pad(flat, ((0, Rp - R2), (0, 0)))

    out = pl.pallas_call(
        _scale_shift_relu_kernel,
        out_shape=jax.ShapeDtypeStruct((Rp, C2), jnp.bfloat16),
        grid_spec=pltpu.PrefetchScalarGridSpec(
            num_scalar_prefetch=0,
            grid=(Rp // bm,),
            in_specs=[pl.BlockSpec((bm, C2), lambda i: (i, 0)),
                      pl.BlockSpec((1, C2), lambda i: (0, 0)),
                      pl.BlockSpec((1, C2), lambda i: (0, 0))],
            out_specs=pl.BlockSpec((bm, C2), lambda i: (i, 0)),
        ),
        compiler_params=pltpu.CompilerParams(
            dimension_semantics=("parallel",),
            vmem_limit_bytes=VMEM_LIMIT),
    )(fp, scale.reshape(1, C2), shift.reshape(1, C2))

    out = out[:R2]
    if fold > 1:
        out = out.reshape(R, C)
    return out


# ------------------------------ conv plumbing -------------------------------- #

def im2col_nhwc(x, kh, kw, stride, pad_h, pad_w):
    """x:(N,H,W,C) -> ((N*Ho*Wo, kh*kw*C), (N,Ho,Wo)); channel-last patches."""
    N, H, W, C = x.shape
    Hout = (H + pad_h[0] + pad_h[1] - kh) // stride + 1
    Wout = (W + pad_w[0] + pad_w[1] - kw) // stride + 1
    xp = jnp.pad(x, ((0, 0), pad_h, pad_w, (0, 0)))
    patches = []
    for i in range(kh):
        for j in range(kw):
            patches.append(
                xp[:, i:i + Hout * stride:stride, j:j + Wout * stride:stride, :])
    cols = jnp.concatenate(patches, axis=-1)            # (N, Ho, Wo, kh*kw*C)
    return cols.reshape(N * Hout * Wout, kh * kw * C), (N, Hout, Wout)


# ------------------------------ the generator -------------------------------- #

CONV_DEFS = {   # name: (Cout, Cin, stride)
    "conv1": (64, 3, 1), "conv2": (128, 64, 2), "conv3": (256, 128, 2),
    "conv4": (512, 256, 2), "conv5": (512, 512, 2), "conv6": (512, 512, 2),
    "convx": (512, 512, 2),
}
DECONV_DEFS = {  # name: (Cin, Cout)
    "deconv1": (512, 512), "deconv2": (1024, 512), "deconv3": (1024, 256),
    "deconv4": (768, 128), "deconv5": (384, 64), "deconv6": (192, 3),
}

# ConvTranspose(k=4,s=2,p=1) parity decomposition:
#   even output index: taps w[3], w[1] over inputs [q-1, q]  (pad 1 before)
#   odd  output index: taps w[2], w[0] over inputs [q, q+1]  (pad 1 after)
_SUB_TAPS = {0: (3, 1), 1: (2, 0)}
_SUB_PADS = {0: (1, 0), 1: (0, 1)}


def init_params(key):
    """Parameters in PyTorch layout (same init scheme as nn.Conv2d defaults)."""
    params = {}
    keys = jax.random.split(key, 2 * (len(CONV_DEFS) + len(DECONV_DEFS)))
    ki = 0
    for name, (cout, cin, _) in CONV_DEFS.items():
        bound = 1.0 / (cin * 9) ** 0.5
        params[name + "_w"] = jax.random.uniform(
            keys[ki], (cout, cin, 3, 3), jnp.float32, -bound, bound); ki += 1
        params[name + "_b"] = jax.random.uniform(
            keys[ki], (cout,), jnp.float32, -bound, bound); ki += 1
        params[name + "_g"] = jnp.ones((cout,), jnp.float32)       # BN gamma
        params[name + "_beta"] = jnp.zeros((cout,), jnp.float32)   # BN beta
    for name, (cin, cout) in DECONV_DEFS.items():
        bound = 1.0 / (cin * 16) ** 0.5
        params[name + "_w"] = jax.random.uniform(
            keys[ki], (cin, cout, 4, 4), jnp.float32, -bound, bound); ki += 1
        params[name + "_b"] = jax.random.uniform(
            keys[ki], (cout,), jnp.float32, -bound, bound); ki += 1
        if name != "deconv6":
            params[name + "_g"] = jnp.ones((cout,), jnp.float32)
            params[name + "_beta"] = jnp.zeros((cout,), jnp.float32)
    return params


def _prep_deconv_w(w):
    """(Cin,Cout,4,4) -> pre-padded bf16 (4, Kp, Np) parity sub-kernel stack."""
    cin, cout = w.shape[0], w.shape[1]
    K = 4 * cin
    Kp, Np = _pad_k(K), _pad_n(cout)
    mats = []
    for a in (0, 1):
        for b in (0, 1):
            wsub = jnp.take(jnp.take(w, jnp.asarray(_SUB_TAPS[a]), axis=2),
                            jnp.asarray(_SUB_TAPS[b]), axis=3)     # (Cin,Cout,2,2)
            mat = jnp.transpose(wsub, (2, 3, 0, 1)).reshape(K, cout)
            mats.append(jnp.pad(mat, ((0, Kp - K), (0, Np - cout))))
    return jnp.stack(mats, axis=0).astype(jnp.bfloat16)


def prepare_params(params):
    """One-time repack: padded bf16 matmul-ready weights (NHWC patch order).
    Conv / deconv1-5 biases are dropped (cancelled by train-mode BN mean)."""
    p = {}
    for name, (cout, cin, _) in CONV_DEFS.items():
        w = params[name + "_w"]                               # (Cout,Cin,3,3)
        K = 9 * cin
        Kp, Np = _pad_k(K), _pad_n(cout)
        mat = jnp.transpose(w, (2, 3, 1, 0)).reshape(K, cout)
        mat = jnp.pad(mat, ((0, Kp - K), (0, Np - cout)))
        p[name + "_w"] = mat.astype(jnp.bfloat16)[None]       # (1, Kp, Np)
        p[name + "_g"] = params[name + "_g"]
        p[name + "_beta"] = params[name + "_beta"]
    for name, (cin, cout) in DECONV_DEFS.items():
        p[name + "_w"] = _prep_deconv_w(params[name + "_w"])  # (4, Kp, Np)
        if name == "deconv6":
            Np = _pad_n(cout)
            p[name + "_b"] = jnp.pad(params[name + "_b"].astype(jnp.float32),
                                     (0, Np - cout)).reshape(1, Np)
        else:
            p[name + "_g"] = params[name + "_g"]
            p[name + "_beta"] = params[name + "_beta"]
    return p


@jax.jit
def generator_forward(x_nchw, wp):
    """Train-mode (batch-stats) BN forward of the U-Net generator."""
    x = jnp.transpose(x_nchw, (0, 2, 3, 1))          # NCHW -> NHWC, once

    def enc(inp, name):
        cout, _, stride = CONV_DEFS[name]
        cols, (n, ho, wo) = im2col_nhwc(inp, 3, 3, stride, (1, 1), (1, 1))
        m = cols.shape[0]
        out, ssum, ssq = fused_matmul_bn_stats(cols[None], wp[name + "_w"])
        flat = bn_relu_apply(out[0], ssum, ssq, m,
                             wp[name + "_g"], wp[name + "_beta"])
        return flat[:m].reshape(n, ho, wo, cout)

    def dec(inp, name, last=False):
        _, cout = DECONV_DEFS[name]
        n, h, w, _ = inp.shape
        cols = jnp.stack(
            [im2col_nhwc(inp, 2, 2, 1, _SUB_PADS[a], _SUB_PADS[b])[0]
             for a in (0, 1) for b in (0, 1)], axis=0)          # (4, M, K)
        m = cols.shape[1]
        if last:
            out = fused_matmul_bias_sigmoid(cols, wp[name + "_w"], wp[name + "_b"])
            out = out[:, :m, :cout]                             # (4, M, 3) f32
        else:
            out, ssum, ssq = fused_matmul_bn_stats(cols, wp[name + "_w"])
            mp = out.shape[1]
            flat = bn_relu_apply(out.reshape(4 * mp, -1), ssum, ssq, 4 * m,
                                 wp[name + "_g"], wp[name + "_beta"])
            out = flat.reshape(4, mp, cout)[:, :m, :]
        # parity interleave: (4, n*h*w, C) -> (n, 2h, 2w, C)
        out = out.reshape(2, 2, n, h, w, cout)
        out = out.transpose(2, 3, 0, 4, 1, 5).reshape(n, 2 * h, 2 * w, cout)
        return out

    x0 = enc(x, "conv1")
    x1 = enc(x0, "conv2")
    x2 = enc(x1, "conv3")
    x3 = enc(x2, "conv4")
    x4 = enc(x3, "conv5")
    x5 = enc(x4, "conv6")
    xx = enc(x5, "convx")

    x6 = jnp.concatenate([dec(xx, "deconv1"), x5], axis=-1)
    x7 = jnp.concatenate([dec(x6, "deconv2"), x4], axis=-1)
    x8 = jnp.concatenate([dec(x7, "deconv3"), x3], axis=-1)
    x9 = jnp.concatenate([dec(x8, "deconv4"), x2], axis=-1)
    x10 = jnp.concatenate([dec(x9, "deconv5"), x1], axis=-1)

    y = dec(x10, "deconv6", last=True)               # bias + sigmoid fused
    return jnp.transpose(y, (0, 3, 1, 2))            # back to NCHW, once


# --------------------- lightweight numerical validation ---------------------- #

def _ref_conv(x_nhwc, w_pt, stride):
    w = jnp.transpose(w_pt, (2, 3, 1, 0))                       # HWIO
    return lax.conv_general_dilated(
        x_nhwc, w, window_strides=(stride, stride), padding=[(1, 1), (1, 1)],
        dimension_numbers=("NHWC", "HWIO", "NHWC"))


def _ref_deconv(x_nhwc, w_pt):
    """PyTorch ConvTranspose2d(k=4,s=2,p=1) via lhs-dilated conv with flipped w."""
    w = jnp.transpose(jnp.flip(w_pt, axis=(2, 3)), (2, 3, 0, 1))
    return lax.conv_general_dilated(
        x_nhwc, w, window_strides=(1, 1), padding=[(2, 2), (2, 2)],
        lhs_dilation=(2, 2), dimension_numbers=("NHWC", "HWIO", "NHWC"))


def _pallas_conv(x_nhwc, w_pt, stride):
    cout, cin = w_pt.shape[0], w_pt.shape[1]
    K = 9 * cin
    Kp, Np = _pad_k(K), _pad_n(cout)
    mat = jnp.transpose(w_pt, (2, 3, 1, 0)).reshape(K, cout)
    mat = jnp.pad(mat, ((0, Kp - K), (0, Np - cout))).astype(jnp.bfloat16)[None]
    cols, (n, ho, wo) = im2col_nhwc(x_nhwc, 3, 3, stride, (1, 1), (1, 1))
    m = cols.shape[0]
    out, _, _ = fused_matmul_bn_stats(cols[None], mat)
    return out[0, :m, :cout].astype(jnp.float32).reshape(n, ho, wo, cout)


def _pallas_deconv_raw(x_nhwc, w_pt):
    cout = w_pt.shape[1]
    n, h, w, _ = x_nhwc.shape
    cols = jnp.stack(
        [im2col_nhwc(x_nhwc, 2, 2, 1, _SUB_PADS[a], _SUB_PADS[b])[0]
         for a in (0, 1) for b in (0, 1)], axis=0)
    m = cols.shape[1]
    out, _, _ = fused_matmul_bn_stats(cols, _prep_deconv_w(w_pt))
    out = out[:, :m, :cout].astype(jnp.float32)
    out = out.reshape(2, 2, n, h, w, cout).transpose(2, 3, 0, 4, 1, 5)
    return out.reshape(n, 2 * h, 2 * w, cout)


if __name__ == "__main__":
    key = jax.random.PRNGKey(0)
    kx, kp, kv = jax.random.split(key, 3)

    # -- validate the im2col conv and ConvTranspose(4,2,1) parity lowering -----
    kv1, kv2, kv3, kv4 = jax.random.split(kv, 4)
    xv = jax.random.normal(kv1, (1, 8, 8, 5), jnp.float32)
    wv = jax.random.uniform(kv2, (7, 5, 3, 3), jnp.float32, -0.4, 0.4)
    err_c = float(jnp.max(jnp.abs(_pallas_conv(xv, wv, 2) - _ref_conv(xv, wv, 2))))
    xd = jax.random.normal(kv3, (1, 4, 4, 6), jnp.float32)
    wd = jax.random.uniform(kv4, (6, 5, 4, 4), jnp.float32, -0.4, 0.4)
    err_d = float(jnp.max(jnp.abs(_pallas_deconv_raw(xd, wd) - _ref_deconv(xd, wd))))
    assert err_c < 0.1, ("conv lowering mismatch", err_c)
    assert err_d < 0.1, ("deconv parity lowering mismatch", err_d)

    # -- full generator forward -------------------------------------------------
    # 64x64 is the minimum spatial size this U-Net topology supports
    # (6 stride-2 downsamples must land on 1x1 for the skip shapes to match).
    x = jax.random.normal(kx, (2, 3, 64, 64), jnp.float32)
    params = init_params(kp)
    wp = prepare_params(params)            # one-time weight repack (padded bf16)

    out = jax.block_until_ready(generator_forward(x, wp))

    assert out.shape == (2, 3, 64, 64), out.shape
    assert bool(jnp.all(jnp.isfinite(out)))
    assert bool(jnp.all((out >= 0.0) & (out <= 1.0)))   # sigmoid range
    print("KERNEL_OK")
</pallas_src>

<mosaic_0001>
module attributes {stable_mosaic.version = 11 : i64} {
  func.func @_mm_bn_kernel(%arg0: i32, %arg1: i32, %arg2: i32, %arg3: i32, %arg4: memref<1x16x48xbf16, #tpu.memory_space<vmem>>, %arg5: memref<1x48x8xbf16, #tpu.memory_space<vmem>>, %arg6: memref<1x16x8xbf16, #tpu.memory_space<vmem>>, %arg7: memref<1x8xf32, #tpu.memory_space<vmem>>, %arg8: memref<1x8xf32, #tpu.memory_space<vmem>>, %arg9: memref<16x8xf32, #tpu.memory_space<vmem>>) attributes {dimension_semantics = [#tpu.dimension_semantics<parallel>, #tpu.dimension_semantics<arbitrary>, #tpu.dimension_semantics<arbitrary>, #tpu.dimension_semantics<arbitrary>], iteration_bounds = array<i64: 1, 1, 1, 1>, scalar_prefetch = 0 : i64, scratch_operands = 1 : i64, tpu.core_type = #tpu.core_type<tc>, window_params = [{transform_indices = @transform_0, window_bounds = array<i64: 1, 16, 48>}, {transform_indices = @transform_1, window_bounds = array<i64: 1, 48, 8>}, {transform_indices = @transform_2, window_bounds = array<i64: 1, 16, 8>}, {transform_indices = @transform_3, window_bounds = array<i64: 1, 8>}, {transform_indices = @transform_4, window_bounds = array<i64: 1, 8>}]} {
    %c0_i32 = arith.constant 0 : i32
    %0 = arith.cmpi eq, %arg3, %c0_i32 : i32
    %1 = arith.extui %0 : i1 to i32
    %c0_i32_0 = arith.constant 0 : i32
    %2 = arith.cmpi ne, %1, %c0_i32_0 : i32
    scf.if %2 {
      %cst_16 = arith.constant 0.000000e+00 : f32
      %21 = vector.broadcast %cst_16 : f32 to vector<16x8xf32>
      %c0_17 = arith.constant 0 : index
      %c0_18 = arith.constant 0 : index
      %22 = vector.load %arg9[%c0_17, %c0_18] : memref<16x8xf32, #tpu.memory_space<vmem>>, vector<16x8xf32>
      tpu.vector_store %arg9[%c0_17, %c0_18], %21 {strides = array<i32>} : memref<16x8xf32, #tpu.memory_space<vmem>>, vector<16x8xf32>,
    } else {
    }
    %c0_i32_1 = arith.constant 0 : i32
    %3 = arith.cmpi eq, %arg1, %c0_i32_1 : i32
    %c0_i32_2 = arith.constant 0 : i32
    %4 = arith.cmpi eq, %arg2, %c0_i32_2 : i32
    %5 = arith.andi %3, %4 : i1
    %c0_i32_3 = arith.constant 0 : i32
    %6 = arith.cmpi eq, %arg3, %c0_i32_3 : i32
    %7 = arith.andi %5, %6 : i1
    %8 = arith.extui %7 : i1 to i32
    %c0_i32_4 = arith.constant 0 : i32
    %9 = arith.cmpi ne, %8, %c0_i32_4 : i32
    scf.if %9 {
      %cst_16 = arith.constant 0.000000e+00 : f32
      %21 = vector.broadcast %cst_16 : f32 to vector<1x8xf32>
      %c0_17 = arith.constant 0 : index
      %c0_18 = arith.constant 0 : index
      %22 = vector.load %arg7[%c0_17, %c0_18] : memref<1x8xf32, #tpu.memory_space<vmem>>, vector<1x8xf32>
      tpu.vector_store %arg7[%c0_17, %c0_18], %21 {strides = array<i32>} : memref<1x8xf32, #tpu.memory_space<vmem>>, vector<1x8xf32>,
      %cst_19 = arith.constant 0.000000e+00 : f32
      %23 = vector.broadcast %cst_19 : f32 to vector<1x8xf32>
      %c0_20 = arith.constant 0 : index
      %c0_21 = arith.constant 0 : index
      %24 = vector.load %arg8[%c0_20, %c0_21] : memref<1x8xf32, #tpu.memory_space<vmem>>, vector<1x8xf32>
      tpu.vector_store %arg8[%c0_20, %c0_21], %23 {strides = array<i32>} : memref<1x8xf32, #tpu.memory_space<vmem>>, vector<1x8xf32>,
    } else {
    }
    %c0 = arith.constant 0 : index
    %c0_5 = arith.constant 0 : index
    %10 = vector.load %arg9[%c0, %c0_5] : memref<16x8xf32, #tpu.memory_space<vmem>>, vector<16x8xf32>
    %c0_6 = arith.constant 0 : index
    %c0_7 = arith.constant 0 : index
    %c0_8 = arith.constant 0 : index
    %11 = vector.load %arg4[%c0_6, %c0_7, %c0_8] : memref<1x16x48xbf16, #tpu.memory_space<vmem>>, vector<1x16x48xbf16>
    %12 = vector.shape_cast %11 : vector<1x16x48xbf16> to vector<16x48xbf16>
    %c0_9 = arith.constant 0 : index
    %c0_10 = arith.constant 0 : index
    %c0_11 = arith.constant 0 : index
    %13 = vector.load %arg5[%c0_9, %c0_10, %c0_11] : memref<1x48x8xbf16, #tpu.memory_space<vmem>>, vector<1x48x8xbf16>
    %14 = vector.shape_cast %13 : vector<1x48x8xbf16> to vector<48x8xbf16>
    %cst = arith.constant dense<0.000000e+00> : vector<16x8xf32>
    %15 = tpu.matmul %12, %14, %cst {dimension_numbers = #tpu.dot_dimension_numbers<[1], [0], [0], [1], [0, 0, 1, 1], [], []>} : vector<16x48xbf16>, vector<48x8xbf16>, vector<16x8xf32> -> vector<16x8xf32>
    %16 = arith.addf %10, %15 : vector<16x8xf32>
    %c0_12 = arith.constant 0 : index
    %c0_13 = arith.constant 0 : index
    %17 = vector.load %arg9[%c0_12, %c0_13] : memref<16x8xf32, #tpu.memory_space<vmem>>, vector<16x8xf32>
    tpu.vector_store %arg9[%c0_12, %c0_13], %16 {strides = array<i32>} : memref<16x8xf32, #tpu.memory_space<vmem>>, vector<16x8xf32>,
    %c0_i32_14 = arith.constant 0 : i32
    %18 = arith.cmpi eq, %arg3, %c0_i32_14 : i32
    %19 = arith.extui %18 : i1 to i32
    %c0_i32_15 = arith.constant 0 : i32
    %20 = arith.cmpi ne, %19, %c0_i32_15 : i32
    scf.if %20 {
      %c0_16 = arith.constant 0 : index
      %c0_17 = arith.constant 0 : index
      %21 = vector.load %arg9[%c0_16, %c0_17] : memref<16x8xf32, #tpu.memory_space<vmem>>, vector<16x8xf32>
      %22 = arith.truncf %21 : vector<16x8xf32> to vector<16x8xbf16>
      %c0_18 = arith.constant 0 : index
      %c0_19 = arith.constant 0 : index
      %c0_20 = arith.constant 0 : index
      %23 = vector.load %arg6[%c0_18, %c0_19, %c0_20] : memref<1x16x8xbf16, #tpu.memory_space<vmem>>, vector<1x16x8xbf16>
      %24 = vector.shape_cast %23 : vector<1x16x8xbf16> to vector<16x8xbf16>
      %25 = vector.shape_cast %22 : vector<16x8xbf16> to vector<1x16x8xbf16>
      tpu.vector_store %arg6[%c0_18, %c0_19, %c0_20], %25 {strides = array<i32>} : memref<1x16x8xbf16, #tpu.memory_space<vmem>>, vector<1x16x8xbf16>,
      %c0_21 = arith.constant 0 : index
      %c0_22 = arith.constant 0 : index
      %26 = vector.load %arg7[%c0_21, %c0_22] : memref<1x8xf32, #tpu.memory_space<vmem>>, vector<1x8xf32>
      %cst_23 = arith.constant dense<0.000000e+00> : vector<8xf32>
      %27 = vector.multi_reduction <add>, %21, %cst_23 [0] : vector<16x8xf32> to vector<8xf32>
      %28 = vector.shape_cast %27 : vector<8xf32> to vector<1x8xf32>
      %29 = arith.addf %26, %28 : vector<1x8xf32>
      %c0_24 = arith.constant 0 : index
      %c0_25 = arith.constant 0 : index
      %30 = vector.load %arg7[%c0_24, %c0_25] : memref<1x8xf32, #tpu.memory_space<vmem>>, vector<1x8xf32>
      tpu.vector_store %arg7[%c0_24, %c0_25], %29 {strides = array<i32>} : memref<1x8xf32, #tpu.memory_space<vmem>>, vector<1x8xf32>,
      %c0_26 = arith.constant 0 : index
      %c0_27 = arith.constant 0 : index
      %31 = vector.load %arg8[%c0_26, %c0_27] : memref<1x8xf32, #tpu.memory_space<vmem>>, vector<1x8xf32>
      %32 = arith.mulf %21, %21 : vector<16x8xf32>
      %cst_28 = arith.constant dense<0.000000e+00> : vector<8xf32>
      %33 = vector.multi_reduction <add>, %32, %cst_28 [0] : vector<16x8xf32> to vector<8xf32>
      %34 = vector.shape_cast %33 : vector<8xf32> to vector<1x8xf32>
      %35 = arith.addf %31, %34 : vector<1x8xf32>
      %c0_29 = arith.constant 0 : index
      %c0_30 = arith.constant 0 : index
      %36 = vector.load %arg8[%c0_29, %c0_30] : memref<1x8xf32, #tpu.memory_space<vmem>>, vector<1x8xf32>
      tpu.vector_store %arg8[%c0_29, %c0_30], %35 {strides = array<i32>} : memref<1x8xf32, #tpu.memory_space<vmem>>, vector<1x8xf32>,
    } else {
    }
    return
  }
  func.func @transform_0(%arg0: i32, %arg1: i32, %arg2: i32, %arg3: i32) -> (i32, i32, i32) {
    %c0_i32 = arith.constant 0 : i32
    return %arg2, %arg1, %arg3 : i32, i32, i32
  }
  func.func @transform_1(%arg0: i32, %arg1: i32, %arg2: i32, %arg3: i32) -> (i32, i32, i32) {
    %c0_i32 = arith.constant 0 : i32
    return %arg2, %arg3, %arg0 : i32, i32, i32
  }
  func.func @transform_2(%arg0: i32, %arg1: i32, %arg2: i32, %arg3: i32) -> (i32, i32, i32) {
    %c0_i32 = arith.constant 0 : i32
    return %arg2, %arg1, %arg0 : i32, i32, i32
  }
  func.func @transform_3(%arg0: i32, %arg1: i32, %arg2: i32, %arg3: i32) -> (i32, i32) {
    %c0_i32 = arith.constant 0 : i32
    %c0_i32_0 = arith.constant 0 : i32
    return %c0_i32, %arg0 : i32, i32
  }
  func.func @transform_4(%arg0: i32, %arg1: i32, %arg2: i32, %arg3: i32) -> (i32, i32) {
    %c0_i32 = arith.constant 0 : i32
    %c0_i32_0 = arith.constant 0 : i32
    return %c0_i32, %arg0 : i32, i32
  }
}

</mosaic_0001>

<llo_original>
// kernel: tpu_custom_call.1
$region0: #{tpu_custom_call.1}
  #allocation0 [shape = 'u32[]', space=smem, size = 0x4, offset = 0x4, fixed_abs, tag = 'smem constant byte address 0x4 - core index']
  #allocation1 [shape = 'u32[144,128]{1,0:T(1,128)}', space=vmem, size = 0x12000, scoped, tag = 'internal scratch']
  #allocation2 [shape = 'f32[16,8]{1,0:T(8,128)}', space=vmem, size = 0x2000, scoped, tag = 'scratch operand']
  %s0 = inlined_call_operand.vmem [shape: bf16[1,16,48], index: 0, kind: input, shape index: {}]
  %s1 = inlined_call_operand.vmem [shape: bf16[1,48,8], index: 1, kind: input, shape index: {}]
  %s2 = inlined_call_operand.vmem [shape: bf16[1,16,8], index: 2, kind: output, shape index: {0}]
  %s3 = inlined_call_operand.hbm [shape: f32[1,8], index: 3, kind: output, shape index: {1}]
  %s4 = inlined_call_operand.hbm [shape: f32[1,8], index: 4, kind: output, shape index: {2}]
  %5 = xla_tuple %s2, %s3, %s4
  %s6 = sld [smem:[#allocation0]]
  $region46: #{tpu_custom_call.1} parent=0
    _
  %s8 = ssub.s32 1, %s6
  %s9 = scalar_select 0, %s8, %s6
  $region1: #{tpu_custom_call.1} parent=0
    #allocation3 [shape = 'u8[512]{0}', space=vmem, size = 0x400, scoped, tag = 'output window, operand 1, single buffered']
    #allocation4 [shape = 's32[1]{0}', space=sflag, size = 0x4, scoped, tag = 'scoped memory for tpu_custom_call.1']
    #allocation5 [shape = 'u8[512]{0}', space=vmem, size = 0x400, scoped, tag = 'output window, operand 2, single buffered']
    #allocation6 [shape = 's32[1]{0}', space=sflag, size = 0x4, scoped, tag = 'scoped memory for tpu_custom_call.1']
    %10 = vsyncpa [#allocation4], 0
    %11 = vsyncpa [#allocation6], 0
    // Predicated region
    $region2: #{tpu_custom_call.1} parent=1 // pred_check
      _
    $region3: #{tpu_custom_call.1} parent=1 // pred_check_branch
      %13 = sbr.rel (0) target = $region5
    $region4: #{tpu_custom_call.1} parent=1 // pred_region
      _
    $region5: #{tpu_custom_call.1} parent=1 // pred_fallthru
      _
    // Predicated region
    $region6: #{tpu_custom_call.1} parent=1 // pred_check
      _
    $region7: #{tpu_custom_call.1} parent=1 // pred_check_branch
      %15 = sbr.rel (0) target = $region9
    $region8: #{tpu_custom_call.1} parent=1 // pred_region
      _
    $region9: #{tpu_custom_call.1} parent=1 // pred_fallthru
      _
    %p17 = scmp.eq.s32.totalorder 0, 0
    // Predicated region
    $region10: #{tpu_custom_call.1} parent=1 // pred_check
      %p18 = pneg %p17
    $region11: #{tpu_custom_call.1} parent=1 // pred_check_branch
      %20 = sbr.rel (%p18) target = $region13
    $region12: #{tpu_custom_call.1} parent=1 // pred_region
      %vm21 = vcmask 64512
      %22 = vst.msk [vmem:[#allocation2] sm:$0xff] %vm21, 0.0
      %23 = vst.msk [vmem:[#allocation2 + $0x8] sm:$0xff] %vm21, 0.0
    $region13: #{tpu_custom_call.1} parent=1 // pred_fallthru
      _
    %p24 = scmp.eq.s32.totalorder 0, 0
    %p25 = scmp.eq.s32.totalorder 0, 0
    %p26 = pnand %p24, %p25
    %p27 = pneg %p26
    %p28 = pnand %p27, %p17
    %p29 = pneg %p28
    // Predicated region
    $region14: #{tpu_custom_call.1} parent=1 // pred_check
      _
    $region15: #{tpu_custom_call.1} parent=1 // pred_check_branch
      %31 = sbr.rel (%p28) target = $region17
    $region16: #{tpu_custom_call.1} parent=1 // pred_region
      %vm32 = vcmask 57344
      %33 = vst.msk [vmem:[#allocation3] sm:$0x1] %vm32, 0.0
      %34 = vst.msk [vmem:[#allocation5] sm:$0x1] %vm32, 0.0
    $region17: #{tpu_custom_call.1} parent=1 // pred_fallthru
      _
    %v35 = vld [vmem:[#allocation2] sm:$0xff]
    %v36 = vld [vmem:[#allocation2 + $0x8] sm:$0xff]
    %v37 = vld [vmem:[%s0] sm:$0xf]
    %v38 = vld [vmem:[%s0 + $0x4] sm:$0xf]
    %v39 = vld [vmem:[%s1] sm:$0xf]
    %v40 = vld [vmem:[%s1 + $0x4] sm:$0xf]
    %v41 = vld [vmem:[%s1 + $0x8] sm:$0xf]
    %v42 = vld [vmem:[%s1 + $0xc] sm:$0xf]
    %v43 = vld [vmem:[%s1 + $0x10] sm:$0xf]
    %v44 = vld [vmem:[%s1 + $0x14] sm:$0xf]
    %v47 = vunpack.c.l.b16 %v37
    %v48 = vunpack.c.l.b16 %v38
    %v49 = vpack.c.b16 %v48, %v47
    %v56 = vunpack.c.l.b16 %v39
    %v57 = vunpack.c.l.b16 %v40
    %v58 = vunpack.c.l.b16 %v41
    %v59 = vunpack.c.l.b16 %v42
    %v60 = vunpack.c.l.b16 %v43
    %v61 = vunpack.c.l.b16 %v44
    %v62 = vpack.c.b16 %v57, %v56
    %v63 = vpack.c.b16 %v59, %v58
    %v64 = vpack.c.b16 %v61, %v60
    %vm68 = vcmask 392192
    %v70 = vsel %vm68, %v49, 0
    %72 = vmatprep.subr.bf16.mxu0 0
    %73 = vmatpush1.bf16.msra.mxu0 %v62
    %74 = vmatprep.subr.bf16.mxu0 0
    %75 = vmatpush1.bf16.msra.mxu0 %v63
    %76 = vmatprep.subr.bf16.mxu0 0
    %77 = vmatpush1.bf16.msra.mxu0 %v64
    %78 = vmatprep.subr.bf16.mxu0 0
    %79 = vmatpush1.bf16.msra.mxu0 0
    %80 = vmatprep.subr.bf16.mxu0 0
    %81 = vmatpush1.bf16.msra.mxu0 0
    %82 = vmatprep.subr.bf16.mxu0 0
    %83 = vmatpush1.bf16.msra.mxu0 0
    %84 = vmatprep.subr.bf16.mxu0 0
    %85 = vmatpush1.bf16.msra.mxu0 0
    %86 = vmatprep.subr.bf16.mxu0 0
    %87 = vmatpush1.bf16.msra.mxu0 0
    %88 = vmatprep.subr.bf16.mxu0 0
    %89 = vmatpush1.bf16.msra.mxu0 0
    %90 = vmatprep.subr.bf16.mxu0 0
    %91 = vmatpush1.bf16.msra.mxu0 0
    %92 = vmatprep.subr.bf16.mxu0 0
    %93 = vmatpush1.bf16.msra.mxu0 0
    %94 = vmatprep.subr.bf16.mxu0 0
    %95 = vmatpush1.bf16.msra.mxu0 0
    %96 = vmatprep.subr.bf16.mxu0 0
    %97 = vmatpush1.bf16.msra.mxu0 0
    %98 = vmatprep.subr.bf16.mxu0 0
    %99 = vmatpush1.bf16.msra.mxu0 0
    %100 = vmatprep.subr.bf16.mxu0 0
    %101 = vmatpush1.bf16.msra.mxu0 0
    %102 = vmatprep.subr.bf16.mxu0 0
    %103 = vmatpush1.bf16.msra.mxu0 0
    %104 = vmatprep.mubr.bf16.mxu0 0
    %105 = vmatmul.mubr.bf16.gmra.mrb[0].mxu0 %v70
    %v106 = vpop.f32.mrb[0].mxu0
    %v107 = vadd.f32 0.0, %v106
    %v108 = vpop.f32.mrb[0].mxu0
    %v109 = vpop.f32.mrb[0].mxu0
    %v110 = vadd.f32 0.0, %v109
    %v111 = vpop.f32.mrb[0].mxu0
    %112 = vdwg.mxu0
    %v113 = vadd.f32 %v35, %v107
    %v114 = vadd.f32 %v36, %v110
    %vm115 = vcmask 64512
    %116 = vst.msk [vmem:[#allocation2] sm:$0xff] %vm115, %v113
    %117 = vst.msk [vmem:[#allocation2 + $0x8] sm:$0xff] %vm115, %v114
    // Predicated region
    $region18: #{tpu_custom_call.1} parent=1 // pred_check
      %p118 = pneg %p17
    $region19: #{tpu_custom_call.1} parent=1 // pred_check_branch
      %120 = sbr.rel (%p118) target = $region21
    $region20: #{tpu_custom_call.1} parent=1 // pred_region
      %v121 = vld [vmem:[#allocation2] sm:$0xff]
      %v122 = vld [vmem:[#allocation2 + $0x8] sm:$0xff]
      %v123 = vpack.c.bf16 %v122, %v121
      %v125 = vunpack.c.l.b16 %v123
      %v126 = vunpack.c.h.b16 %v123
      %v127 = vpack.c.b16 %v125, %v125
      %v128 = vpack.c.b16 %v126, %v126
      %vm131 = vcmask 60416
      %132 = vst.msk [vmem:[%s2] sm:$0xf] %vm131, %v127
      %133 = vst.msk [vmem:[%s2 + $0x4] sm:$0xf] %vm131, %v128
      %v134 = vld [vmem:[#allocation3] sm:$0x1]
      %v135 = vsel %vm115, %v121, 0.0
      %v136 = vsel %vm115, %v122, 0.0
      %v137 = vadd.f32 %v135, %v136
      %v138 = vrot.slane %v137, 4
      %v139 = vadd.f32 %v137, %v138
      %v140 = vrot.slane %v139, 2
      %v141 = vadd.f32 %v139, %v140
      %v142 = vrot.slane %v141, 1
      %v143 = vadd.f32 %v141, %v142
      %v144 = vadd.f32 %v134, %v143
      %vm145 = vcmask 57344
      %146 = vst.msk [vmem:[#allocation3] sm:$0x1] %vm145, %v144
      %v147 = vld [vmem:[#allocation5] sm:$0x1]
      %v148 = vmul.f32 %v121, %v121
      %v149 = vmul.f32 %v122, %v122
      %v150 = vsel %vm115, %v148, 0.0
      %v151 = vsel %vm115, %v149, 0.0
      %v152 = vadd.f32 %v150, %v151
      %v153 = vrot.slane %v152, 4
      %v154 = vadd.f32 %v152, %v153
      %v155 = vrot.slane %v154, 2
      %v156 = vadd.f32 %v154, %v155
      %v157 = vrot.slane %v156, 1
      %v158 = vadd.f32 %v156, %v157
      %v159 = vadd.f32 %v147, %v158
      %160 = vst.msk [vmem:[#allocation5] sm:$0x1] %vm145, %v159
    $region21: #{tpu_custom_call.1} parent=1 // pred_fallthru
      _
    // Predicated region
    $region22: #{tpu_custom_call.1} parent=1 // pred_check
      _
    $region23: #{tpu_custom_call.1} parent=1 // pred_check_branch
      %162 = sbr.rel (0) target = $region25
    $region24: #{tpu_custom_call.1} parent=1 // pred_region
      _
    $region25: #{tpu_custom_call.1} parent=1 // pred_fallthru
      _
    // Predicated region
    $region26: #{tpu_custom_call.1} parent=1 // pred_check
      _
    $region27: #{tpu_custom_call.1} parent=1 // pred_check_branch
      %164 = sbr.rel (0) target = $region29
    $region28: #{tpu_custom_call.1} parent=1 // pred_region
      %s166 = ssub.s32 16, 16
      %167 = vsyncadd [#allocation4], %s166
      %s169 = sshll.u32 [#allocation3], 4
      %s170 = int_to_ptr.vmem [resolvable:$true] %s169
      %172 = dma.vmem_to_hbm [thread:$0]  %s170, 16, %s3, [#allocation4]
    $region29: #{tpu_custom_call.1} parent=1 // pred_fallthru
      _
    // Predicated region
    $region30: #{tpu_custom_call.1} parent=1 // pred_check
      _
    $region31: #{tpu_custom_call.1} parent=1 // pred_check_branch
      %174 = sbr.rel (0) target = $region33
    $region32: #{tpu_custom_call.1} parent=1 // pred_region
      %s176 = ssub.s32 16, 16
      %177 = vsyncadd [#allocation6], %s176
      %s179 = sshll.u32 [#allocation5], 4
      %s180 = int_to_ptr.vmem [resolvable:$true] %s179
      %182 = dma.vmem_to_hbm [thread:$0]  %s180, 16, %s4, [#allocation6]
    $region33: #{tpu_custom_call.1} parent=1 // pred_fallthru
      _
    // Predicated region
    $region34: #{tpu_custom_call.1} parent=1 // pred_check
      _
    $region35: #{tpu_custom_call.1} parent=1 // pred_check_branch
      %184 = sbr.rel (0) target = $region37
    $region36: #{tpu_custom_call.1} parent=1 // pred_region
      _
    $region37: #{tpu_custom_call.1} parent=1 // pred_fallthru
      _
    // Predicated region
    $region38: #{tpu_custom_call.1} parent=1 // pred_check
      _
    $region39: #{tpu_custom_call.1} parent=1 // pred_check_branch
      %186 = sbr.rel (0) target = $region41
    $region40: #{tpu_custom_call.1} parent=1 // pred_region
      %187 = dma.done [#allocation4], 16
    $region41: #{tpu_custom_call.1} parent=1 // pred_fallthru
      _
    // Predicated region
    $region42: #{tpu_custom_call.1} parent=1 // pred_check
      _
    $region43: #{tpu_custom_call.1} parent=1 // pred_check_branch
      %189 = sbr.rel (0) target = $region45
    $region44: #{tpu_custom_call.1} parent=1 // pred_region
      %190 = dma.done [#allocation6], 16
    $region45: #{tpu_custom_call.1} parent=1 // pred_fallthru
      _
    %191 = vsyncpa [#allocation4], 1
    %192 = vsyncpa [#allocation6], 1

</llo_original>
